<compile_context>
chip_gen: v7x
topology: tpu7x:2x2x1
jax: 0.10.0
libtpu: 0.0.40
codegen_flags: <defaults>
</compile_context>

<pallas_src>
import functools
import numpy as np
import jax
import jax.numpy as jnp
from jax.experimental import pallas as pl
from jax.experimental.pallas import tpu as pltpu


def _round_up(x, m):
    return (x + m - 1) // m * m


def _vmem_limit_bytes():
    # Generation-aware scoped-VMEM limit: ~half of physical per-core VMEM,
    # clamped to [32 MiB, 64 MiB] so it is safe on v7x (64 MiB/TC) as well as
    # v5e/v6e (128 MiB).  Largest per-step working set here is ~18 MiB.
    try:
        cap = int(pltpu.get_tpu_info().vmem_capacity_bytes)
    except Exception:
        cap = 64 * 1024 * 1024
    return max(32 * 1024 * 1024, min(cap // 2, 64 * 1024 * 1024))


_VMEM_LIMIT = _vmem_limit_bytes()
_TM_MAX = 512                       # max M tile
_RESIDENT_B_BYTES = 6 * 1024 * 1024  # keep weights VMEM-resident below this


def _m_tiling(M):
    """Adaptive M tiling: nt = ceil(M/512) tiles, tile = ceil(M/nt) rounded
    to a multiple of 8 -> minimal padded waste at any M."""
    nt = -(-M // _TM_MAX)
    tm = _round_up(-(-M // nt), 8)
    return tm, tm * nt


def _channel_tile(C, cap=512):
    """Largest channel tile that is a multiple of 128 and divides C; else C
    (a full-dim block also satisfies the (8,128) rule)."""
    for t in (512, 384, 256, 128):
        if t <= cap and C % t == 0:
            return t
    return C


# ----------------------------------------------------------------------------
# Pallas kernels
# ----------------------------------------------------------------------------
def _mm_bn_act_kernel(relu, a_ref, b_ref, s_ref, c_ref, o_ref):
    # bf16 (or f32) operands, f32 accumulation on the MXU, f32 BN epilogue,
    # single bf16 (or f32) store per tile.
    acc = jnp.dot(a_ref[...], b_ref[...], preferred_element_type=jnp.float32)
    acc = acc * s_ref[...] + c_ref[...]
    if relu:
        acc = jnp.maximum(acc, 0.0)
    o_ref[...] = acc.astype(o_ref.dtype)


@functools.partial(jax.jit, static_argnames=("relu", "tm", "tn", "out_dtype"))
def _matmul_padded(a, b, s, c, *, relu, tm, tn, out_dtype):
    Mp, K = a.shape
    _, Np = b.shape
    return pl.pallas_call(
        functools.partial(_mm_bn_act_kernel, relu),
        out_shape=jax.ShapeDtypeStruct((Mp, Np), out_dtype),
        grid=(Mp // tm, Np // tn),
        in_specs=[
            pl.BlockSpec((tm, K), lambda i, j: (i, 0)),     # A streams over i
            pl.BlockSpec((K, tn), lambda i, j: (0, j)),     # B resident if tn==Np
            pl.BlockSpec((1, tn), lambda i, j: (0, j)),
            pl.BlockSpec((1, tn), lambda i, j: (0, j)),
        ],
        out_specs=pl.BlockSpec((tm, tn), lambda i, j: (i, j)),
        compiler_params=pltpu.CompilerParams(
            dimension_semantics=("parallel", "parallel"),
            vmem_limit_bytes=_VMEM_LIMIT,
        ),
    )(a, b, s, c)


def _pad2d(x, rows, cols):
    r, c = x.shape
    if r == rows and c == cols:
        return x
    return jnp.pad(x, ((0, rows - r), (0, cols - c)))


def matmul_scale_bias(a, b, scale, bias, relu=True,
                      compute_dtype=jnp.bfloat16, out_dtype=jnp.float32):
    """out = act((a @ b) * scale + bias); a:(M,K), b:(K,N), scale/bias:(N,).
    K is never padded; N is padded to 128 (weights only); M padded to the
    adaptive tile."""
    M, K = a.shape
    _, N = b.shape
    Np = _round_up(N, 128)
    tm, Mp = _m_tiling(M)
    itemsize = np.dtype(compute_dtype).itemsize
    if K * Np * itemsize <= _RESIDENT_B_BYTES:
        tn = Np                          # single N tile: weights DMA'd once
    elif Np % 256 == 0:
        tn = 256                         # 256-wide MXU on v6e/v7x
    else:
        tn = 128
    a_p = _pad2d(a.astype(compute_dtype), Mp, K)
    b_p = _pad2d(b.astype(compute_dtype), K, Np)
    s_p = _pad2d(scale.astype(jnp.float32).reshape(1, N), 1, Np)
    c_p = _pad2d(bias.astype(jnp.float32).reshape(1, N), 1, Np)
    out = _matmul_padded(a_p, b_p, s_p, c_p, relu=relu, tm=tm, tn=tn,
                         out_dtype=np.dtype(out_dtype))
    if Mp != M or Np != N:
        # padded M rows got BN bias added (garbage) -> must slice them off
        out = out[:M, :N]
    return out


def _maxpool3_dense_kernel(x_ref, o_ref):
    # dense 3x3 / stride-1 max (contiguous slices only), per (batch, C-tile).
    Hd, Wd = o_ref.shape[1], o_ref.shape[2]
    r = jnp.maximum(jnp.maximum(x_ref[0, :, 0:Wd, :], x_ref[0, :, 1:Wd + 1, :]),
                    x_ref[0, :, 2:Wd + 2, :])
    o_ref[0] = jnp.maximum(jnp.maximum(r[0:Hd], r[1:Hd + 1]), r[2:Hd + 2])


@jax.jit
def _maxpool3x3_dense(x):
    N, H, W, C = x.shape
    Hd, Wd = H - 2, W - 2
    ct = _channel_tile(C)
    return pl.pallas_call(
        _maxpool3_dense_kernel,
        out_shape=jax.ShapeDtypeStruct((N, Hd, Wd, C), x.dtype),
        grid=(N, C // ct),
        in_specs=[pl.BlockSpec((1, H, W, ct), lambda n, c: (n, 0, 0, c))],
        out_specs=pl.BlockSpec((1, Hd, Wd, ct), lambda n, c: (n, 0, 0, c)),
        compiler_params=pltpu.CompilerParams(
            dimension_semantics=("parallel", "parallel"),
            vmem_limit_bytes=_VMEM_LIMIT,
        ),
    )(x)


def _avgpool3x3_kernel(x_ref, o_ref):
    # separable 3x3 / stride-1 / pad-1 average pool (count_include_pad=True):
    # 2 adds along dx then 2 adds along dy (4 instead of 8), f32 accumulation.
    H, W = o_ref.shape[1], o_ref.shape[2]
    row = (x_ref[0, :, 0:W, :].astype(jnp.float32)
           + x_ref[0, :, 1:W + 1, :].astype(jnp.float32)
           + x_ref[0, :, 2:W + 2, :].astype(jnp.float32))
    o_ref[0] = ((row[0:H] + row[1:H + 1] + row[2:H + 2])
                * (1.0 / 9.0)).astype(o_ref.dtype)


@jax.jit
def _avgpool3x3(xp):
    N, Hp, Wp, C = xp.shape
    H, W = Hp - 2, Wp - 2
    ct = _channel_tile(C)
    return pl.pallas_call(
        _avgpool3x3_kernel,
        out_shape=jax.ShapeDtypeStruct((N, H, W, C), xp.dtype),
        grid=(N, C // ct),
        in_specs=[pl.BlockSpec((1, Hp, Wp, ct), lambda n, c: (n, 0, 0, c))],
        out_specs=pl.BlockSpec((1, H, W, ct), lambda n, c: (n, 0, 0, c)),
        compiler_params=pltpu.CompilerParams(
            dimension_semantics=("parallel", "parallel"),
            vmem_limit_bytes=_VMEM_LIMIT,
        ),
    )(xp)


def _mean_axis0_kernel(x_ref, o_ref):
    k = x_ref.shape[0]
    o_ref[...] = jnp.sum(x_ref[...].astype(jnp.float32), axis=0) * (1.0 / k)


@jax.jit
def _mean_axis0(xp):
    K, Mp, Cp = xp.shape
    tm = Mp if Mp <= 512 else 512
    return pl.pallas_call(
        _mean_axis0_kernel,
        out_shape=jax.ShapeDtypeStruct((Mp, Cp), jnp.float32),
        grid=(Mp // tm,),
        in_specs=[pl.BlockSpec((K, tm, Cp), lambda i: (0, i, 0))],
        out_specs=pl.BlockSpec((tm, Cp), lambda i: (i, 0)),
        compiler_params=pltpu.CompilerParams(
            dimension_semantics=("parallel",),
            vmem_limit_bytes=_VMEM_LIMIT,
        ),
    )(xp)


# ----------------------------------------------------------------------------
# Layer helpers (glue: slicing / reshape only; compute goes through Pallas)
# ----------------------------------------------------------------------------
def conv2d_bn_relu(x, p):
    """x: NHWC; p: dict(w=(KH,KW,Cin,Cout) bf16, scale/bias f32, stride, pad)."""
    w = p["w"]
    sh, sw = p["stride"]
    ph, pw = p["pad"]
    N, H, W, C = x.shape
    KH, KW, _, OC = w.shape
    OH = (H + 2 * ph - KH) // sh + 1
    OW = (W + 2 * pw - KW) // sw + 1
    xb = x.astype(jnp.bfloat16)
    if ph or pw:
        xb = jnp.pad(xb, ((0, 0), (ph, ph), (pw, pw), (0, 0)))
    if KH == 1 and KW == 1 and sh == 1 and sw == 1:
        a = xb.reshape(N * OH * OW, C)                  # no im2col for 1x1/s1
    else:
        # TODO(synk): implicit-GEMM (tap-axis) conv without materialized im2col.
        views = [xb[:, dy:dy + sh * OH:sh, dx:dx + sw * OW:sw, :]
                 for dy in range(KH) for dx in range(KW)]
        patches = views[0] if len(views) == 1 else jnp.concatenate(views, -1)
        a = patches.reshape(N * OH * OW, KH * KW * C)   # (M, K) bf16, K unpadded
    b = w.reshape(KH * KW * C, OC)                      # (K, OC) bf16
    out = matmul_scale_bias(a, b, p["scale"], p["bias"], relu=True,
                            compute_dtype=jnp.bfloat16, out_dtype=jnp.bfloat16)
    return out.reshape(N, OH, OW, OC)


def conv2d_bn_relu_heads(x, p):
    """Fused sibling 1x1 convs sharing the same input: one matmul, then a
    channel split back into the individual branch heads."""
    out = conv2d_bn_relu(x, p)
    idx = np.cumsum(p["splits"])[:-1].tolist()
    return jnp.split(out, idx, axis=-1)


def max_pool_3x3_s2(x):
    # single-input dense 3x3/s1 max kernel + stride-2 subsample in glue.
    # TODO(synk): fold the stride-2 subsample into the kernel (strided pl.ds
    #             reads) to also drop the dense intermediate.
    dense = _maxpool3x3_dense(x)
    return dense[:, ::2, ::2, :]


def avg_pool_3x3_s1_p1(x):
    # matches F.avg_pool2d(kernel=3, stride=1, padding=1, count_include_pad=True)
    xp = jnp.pad(x, ((0, 0), (1, 1), (1, 1), (0, 0)))
    return _avgpool3x3(xp)


def global_avg_pool_nchw(x):
    # AdaptiveAvgPool2d((1,1)); x is NHWC; returns NCHW (N, C, 1, 1) in f32.
    N, H, W, C = x.shape
    stacked = jnp.transpose(x.reshape(N, H * W, C), (1, 0, 2))   # (HW, N, C)
    Mp = _round_up(N, 8) if N <= 512 else _round_up(N, 512)
    if Mp != N:
        stacked = jnp.pad(stacked, ((0, 0), (0, Mp - N), (0, 0)))
    out = _mean_axis0(stacked)[:N, :]
    return out.reshape(N, C, 1, 1)


def _bilinear_matrix(in_size, out_size):
    # PyTorch F.interpolate(mode='bilinear', align_corners=False) row weights.
    A = np.zeros((out_size, in_size), dtype=np.float32)
    if in_size == 1:
        A[:, 0] = 1.0
        return A
    scale = in_size / out_size
    for i in range(out_size):
        src = (i + 0.5) * scale - 0.5
        src = max(src, 0.0)
        i0 = int(np.floor(src))
        lam = src - i0
        i0 = min(i0, in_size - 1)
        i1 = min(i0 + 1, in_size - 1)
        A[i, i0] += 1.0 - lam
        A[i, i1] += lam
    return A


def resize_bilinear_nchw(x, out_h, out_w):
    N, C, H, W = x.shape
    Ah = jnp.asarray(_bilinear_matrix(H, out_h))
    Aw = jnp.asarray(_bilinear_matrix(W, out_w))
    # interpolate along H (f32 Pallas matmul, no activation)
    xh = jnp.transpose(x, (2, 0, 1, 3)).reshape(H, N * C * W)
    y = matmul_scale_bias(Ah, xh, jnp.ones((N * C * W,), jnp.float32),
                          jnp.zeros((N * C * W,), jnp.float32),
                          relu=False, compute_dtype=jnp.float32,
                          out_dtype=jnp.float32)
    y = y.reshape(out_h, N, C, W)
    # interpolate along W
    yw = jnp.transpose(y, (3, 1, 2, 0)).reshape(W, N * C * out_h)
    z = matmul_scale_bias(Aw, yw, jnp.ones((N * C * out_h,), jnp.float32),
                          jnp.zeros((N * C * out_h,), jnp.float32),
                          relu=False, compute_dtype=jnp.float32,
                          out_dtype=jnp.float32)
    z = z.reshape(out_w, N, C, out_h)
    return jnp.transpose(z, (1, 2, 3, 0))                        # (N, C, oh, ow)


# ----------------------------------------------------------------------------
# Parameter construction (synthetic, deterministic)
# ----------------------------------------------------------------------------
class _ParamFactory:
    def __init__(self, seed=0):
        self.rng = np.random.default_rng(seed)

    def conv_bn(self, cin, cout, kh, kw):
        fan_in = kh * kw * cin
        w = self.rng.standard_normal((kh, kw, cin, cout)).astype(np.float32)
        w *= np.float32(1.0 / np.sqrt(fan_in))
        gamma = 1.0 + 0.05 * self.rng.standard_normal(cout).astype(np.float32)
        beta = 0.05 * self.rng.standard_normal(cout).astype(np.float32)
        r_mean = 0.05 * self.rng.standard_normal(cout).astype(np.float32)
        r_var = (1.0 + 0.05 * self.rng.standard_normal(cout).astype(np.float32)) ** 2
        eps = 1e-3                                    # BatchNorm2d eps in BasicConv2d
        scale = gamma / np.sqrt(r_var + eps)
        bias = beta - r_mean * scale
        # weights pre-cast to bf16 (matmul operand dtype); BN affine stays f32
        return dict(w=jnp.asarray(w, dtype=jnp.bfloat16),
                    scale=jnp.asarray(scale), bias=jnp.asarray(bias))


def _add(P, pf, name, cin, cout, k, stride=1, pad=0):
    kh, kw = (k, k) if isinstance(k, int) else k
    p = pf.conv_bn(cin, cout, kh, kw)
    p["stride"] = (stride, stride) if isinstance(stride, int) else stride
    p["pad"] = (pad, pad) if isinstance(pad, int) else pad
    P[name] = p


def _fuse_heads(P, key, names):
    """Concatenate sibling 1x1 convs (same input) along Cout into one param."""
    P[key] = dict(
        w=jnp.concatenate([P[n]["w"] for n in names], axis=-1),
        scale=jnp.concatenate([P[n]["scale"] for n in names]),
        bias=jnp.concatenate([P[n]["bias"] for n in names]),
        stride=(1, 1), pad=(0, 0),
        splits=tuple(int(P[n]["w"].shape[-1]) for n in names),
    )


def init_inception_params(seed=0):
    pf = _ParamFactory(seed)
    P = {}
    # stem
    _add(P, pf, "Conv2d_1a_3x3", 3, 32, 3, stride=2)
    _add(P, pf, "Conv2d_2a_3x3", 32, 32, 3)
    _add(P, pf, "Conv2d_2b_3x3", 32, 64, 3, pad=1)
    _add(P, pf, "Conv2d_3b_1x1", 64, 80, 1)
    _add(P, pf, "Conv2d_4a_3x3", 80, 192, 3)

    def inception_a(pre, cin, pool_feat):
        _add(P, pf, pre + ".branch1x1", cin, 64, 1)
        _add(P, pf, pre + ".branch5x5_1", cin, 48, 1)
        _add(P, pf, pre + ".branch5x5_2", 48, 64, 5, pad=2)
        _add(P, pf, pre + ".branch3x3dbl_1", cin, 64, 1)
        _add(P, pf, pre + ".branch3x3dbl_2", 64, 96, 3, pad=1)
        _add(P, pf, pre + ".branch3x3dbl_3", 96, 96, 3, pad=1)
        _add(P, pf, pre + ".branch_pool", cin, pool_feat, 1)

    inception_a("Mixed_5b", 192, 32)
    inception_a("Mixed_5c", 256, 64)
    inception_a("Mixed_5d", 288, 64)

    # Mixed_6a (InceptionB)
    _add(P, pf, "Mixed_6a.branch3x3", 288, 384, 3, stride=2)
    _add(P, pf, "Mixed_6a.branch3x3dbl_1", 288, 64, 1)
    _add(P, pf, "Mixed_6a.branch3x3dbl_2", 64, 96, 3, pad=1)
    _add(P, pf, "Mixed_6a.branch3x3dbl_3", 96, 96, 3, stride=2)

    def inception_c(pre, c7):
        _add(P, pf, pre + ".branch1x1", 768, 192, 1)
        _add(P, pf, pre + ".branch7x7_1", 768, c7, 1)
        _add(P, pf, pre + ".branch7x7_2", c7, c7, (1, 7), pad=(0, 3))
        _add(P, pf, pre + ".branch7x7_3", c7, 192, (7, 1), pad=(3, 0))
        _add(P, pf, pre + ".branch7x7dbl_1", 768, c7, 1)
        _add(P, pf, pre + ".branch7x7dbl_2", c7, c7, (7, 1), pad=(3, 0))
        _add(P, pf, pre + ".branch7x7dbl_3", c7, c7, (1, 7), pad=(0, 3))
        _add(P, pf, pre + ".branch7x7dbl_4", c7, c7, (7, 1), pad=(3, 0))
        _add(P, pf, pre + ".branch7x7dbl_5", c7, 192, (1, 7), pad=(0, 3))
        _add(P, pf, pre + ".branch_pool", 768, 192, 1)

    inception_c("Mixed_6b", 128)
    inception_c("Mixed_6c", 160)
    inception_c("Mixed_6d", 160)
    inception_c("Mixed_6e", 192)

    # Mixed_7a (InceptionD)
    _add(P, pf, "Mixed_7a.branch3x3_1", 768, 192, 1)
    _add(P, pf, "Mixed_7a.branch3x3_2", 192, 320, 3, stride=2)
    _add(P, pf, "Mixed_7a.branch7x7x3_1", 768, 192, 1)
    _add(P, pf, "Mixed_7a.branch7x7x3_2", 192, 192, (1, 7), pad=(0, 3))
    _add(P, pf, "Mixed_7a.branch7x7x3_3", 192, 192, (7, 1), pad=(3, 0))
    _add(P, pf, "Mixed_7a.branch7x7x3_4", 192, 192, 3, stride=2)

    def inception_e(pre, cin):
        _add(P, pf, pre + ".branch1x1", cin, 320, 1)
        _add(P, pf, pre + ".branch3x3_1", cin, 384, 1)
        _add(P, pf, pre + ".branch3x3_2a", 384, 384, (1, 3), pad=(0, 1))
        _add(P, pf, pre + ".branch3x3_2b", 384, 384, (3, 1), pad=(1, 0))
        _add(P, pf, pre + ".branch3x3dbl_1", cin, 448, 1)
        _add(P, pf, pre + ".branch3x3dbl_2", 448, 384, 3, pad=1)
        _add(P, pf, pre + ".branch3x3dbl_3a", 384, 384, (1, 3), pad=(0, 1))
        _add(P, pf, pre + ".branch3x3dbl_3b", 384, 384, (3, 1), pad=(1, 0))
        _add(P, pf, pre + ".branch_pool", cin, 192, 1)

    inception_e("Mixed_7b", 1280)
    inception_e("Mixed_7c", 2048)

    # fused 1x1 "head" groups (same input activation -> one matmul each)
    for pre in ("Mixed_5b", "Mixed_5c", "Mixed_5d"):
        _fuse_heads(P, pre + ".heads",
                    [pre + ".branch1x1", pre + ".branch5x5_1",
                     pre + ".branch3x3dbl_1"])
    for pre in ("Mixed_6b", "Mixed_6c", "Mixed_6d", "Mixed_6e"):
        _fuse_heads(P, pre + ".heads",
                    [pre + ".branch1x1", pre + ".branch7x7_1",
                     pre + ".branch7x7dbl_1"])
    _fuse_heads(P, "Mixed_7a.heads",
                ["Mixed_7a.branch3x3_1", "Mixed_7a.branch7x7x3_1"])
    for pre in ("Mixed_7b", "Mixed_7c"):
        _fuse_heads(P, pre + ".heads",
                    [pre + ".branch1x1", pre + ".branch3x3_1",
                     pre + ".branch3x3dbl_1"])
    return P


# ----------------------------------------------------------------------------
# Inception mixed blocks (forward)
# ----------------------------------------------------------------------------
def _mixed_a(P, pre, x):
    b1, b5, bd = conv2d_bn_relu_heads(x, P[pre + ".heads"])
    b5 = conv2d_bn_relu(b5, P[pre + ".branch5x5_2"])
    bd = conv2d_bn_relu(bd, P[pre + ".branch3x3dbl_2"])
    bd = conv2d_bn_relu(bd, P[pre + ".branch3x3dbl_3"])
    bp = conv2d_bn_relu(avg_pool_3x3_s1_p1(x), P[pre + ".branch_pool"])
    return jnp.concatenate([b1, b5, bd, bp], axis=-1)


def _mixed_b(P, pre, x):
    b3 = conv2d_bn_relu(x, P[pre + ".branch3x3"])
    bd = conv2d_bn_relu(x, P[pre + ".branch3x3dbl_1"])
    bd = conv2d_bn_relu(bd, P[pre + ".branch3x3dbl_2"])
    bd = conv2d_bn_relu(bd, P[pre + ".branch3x3dbl_3"])
    bp = max_pool_3x3_s2(x)
    return jnp.concatenate([b3, bd, bp], axis=-1)


def _mixed_c(P, pre, x):
    b1, b7, bd = conv2d_bn_relu_heads(x, P[pre + ".heads"])
    b7 = conv2d_bn_relu(b7, P[pre + ".branch7x7_2"])
    b7 = conv2d_bn_relu(b7, P[pre + ".branch7x7_3"])
    bd = conv2d_bn_relu(bd, P[pre + ".branch7x7dbl_2"])
    bd = conv2d_bn_relu(bd, P[pre + ".branch7x7dbl_3"])
    bd = conv2d_bn_relu(bd, P[pre + ".branch7x7dbl_4"])
    bd = conv2d_bn_relu(bd, P[pre + ".branch7x7dbl_5"])
    bp = conv2d_bn_relu(avg_pool_3x3_s1_p1(x), P[pre + ".branch_pool"])
    return jnp.concatenate([b1, b7, bd, bp], axis=-1)


def _mixed_d(P, pre, x):
    b3, b7 = conv2d_bn_relu_heads(x, P[pre + ".heads"])
    b3 = conv2d_bn_relu(b3, P[pre + ".branch3x3_2"])
    b7 = conv2d_bn_relu(b7, P[pre + ".branch7x7x3_2"])
    b7 = conv2d_bn_relu(b7, P[pre + ".branch7x7x3_3"])
    b7 = conv2d_bn_relu(b7, P[pre + ".branch7x7x3_4"])
    bp = max_pool_3x3_s2(x)
    return jnp.concatenate([b3, b7, bp], axis=-1)


def _mixed_e(P, pre, x):
    b1, b3, bd = conv2d_bn_relu_heads(x, P[pre + ".heads"])
    b3 = jnp.concatenate([conv2d_bn_relu(b3, P[pre + ".branch3x3_2a"]),
                          conv2d_bn_relu(b3, P[pre + ".branch3x3_2b"])], axis=-1)
    bd = conv2d_bn_relu(bd, P[pre + ".branch3x3dbl_2"])
    bd = jnp.concatenate([conv2d_bn_relu(bd, P[pre + ".branch3x3dbl_3a"]),
                          conv2d_bn_relu(bd, P[pre + ".branch3x3dbl_3b"])], axis=-1)
    bp = conv2d_bn_relu(avg_pool_3x3_s1_p1(x), P[pre + ".branch_pool"])
    return jnp.concatenate([b1, b3, bd, bp], axis=-1)


# ----------------------------------------------------------------------------
# Full forward (mirrors InceptionV3.forward in HW4/DCGAN.py)
# ----------------------------------------------------------------------------
def inception_v3_forward(P, inp_nchw, output_blocks=(3,),
                         resize_input=True, normalize_input=True):
    output_blocks = sorted(output_blocks)
    last = max(output_blocks)
    assert last <= 3
    outputs = []

    x = inp_nchw.astype(jnp.float32)
    if resize_input:
        x = resize_bilinear_nchw(x, 299, 299)
    if normalize_input:
        x = 2.0 * x - 1.0
    x = jnp.transpose(x, (0, 2, 3, 1))                   # NCHW -> NHWC (internal)

    # ---- block 0 ----
    x = conv2d_bn_relu(x, P["Conv2d_1a_3x3"])
    x = conv2d_bn_relu(x, P["Conv2d_2a_3x3"])
    x = conv2d_bn_relu(x, P["Conv2d_2b_3x3"])
    x = max_pool_3x3_s2(x)
    if 0 in output_blocks:
        outputs.append(jnp.transpose(x, (0, 3, 1, 2)).astype(jnp.float32))
    if last == 0:
        return outputs

    # ---- block 1 ----
    x = conv2d_bn_relu(x, P["Conv2d_3b_1x1"])
    x = conv2d_bn_relu(x, P["Conv2d_4a_3x3"])
    x = max_pool_3x3_s2(x)
    if 1 in output_blocks:
        outputs.append(jnp.transpose(x, (0, 3, 1, 2)).astype(jnp.float32))
    if last == 1:
        return outputs

    # ---- block 2 ----
    x = _mixed_a(P, "Mixed_5b", x)
    x = _mixed_a(P, "Mixed_5c", x)
    x = _mixed_a(P, "Mixed_5d", x)
    x = _mixed_b(P, "Mixed_6a", x)
    x = _mixed_c(P, "Mixed_6b", x)
    x = _mixed_c(P, "Mixed_6c", x)
    x = _mixed_c(P, "Mixed_6d", x)
    x = _mixed_c(P, "Mixed_6e", x)
    if 2 in output_blocks:
        outputs.append(jnp.transpose(x, (0, 3, 1, 2)).astype(jnp.float32))
    if last == 2:
        return outputs

    # ---- block 3 ----
    x = _mixed_d(P, "Mixed_7a", x)
    x = _mixed_e(P, "Mixed_7b", x)
    x = _mixed_e(P, "Mixed_7c", x)
    feat = global_avg_pool_nchw(x)                       # (N, 2048, 1, 1) f32 NCHW
    if 3 in output_blocks:
        outputs.append(feat)
    return outputs


# ----------------------------------------------------------------------------
if __name__ == "__main__":
    key = jax.random.PRNGKey(0)
    x = jax.random.uniform(key, (2, 3, 16, 16), dtype=jnp.float32)  # NCHW, like PyTorch

    params = init_inception_params(seed=0)
    outs = inception_v3_forward(params, x, output_blocks=(3,),
                                resize_input=True, normalize_input=True)
    outs = [jax.block_until_ready(o) for o in outs]

    assert len(outs) == 1
    assert outs[0].shape == (2, 2048, 1, 1), outs[0].shape
    assert outs[0].dtype == jnp.float32
    assert bool(jnp.all(jnp.isfinite(outs[0])))
    print("KERNEL_OK")
</pallas_src>

<mosaic_0001>
module attributes {stable_mosaic.version = 11 : i64} {
  func.func @_mm_bn_act_kernel(%arg0: i32, %arg1: i32, %arg2: memref<304x16xf32, #tpu.memory_space<vmem>>, %arg3: memref<16x128xf32, #tpu.memory_space<vmem>>, %arg4: memref<1x128xf32, #tpu.memory_space<vmem>>, %arg5: memref<1x128xf32, #tpu.memory_space<vmem>>, %arg6: memref<304x128xf32, #tpu.memory_space<vmem>>) attributes {dimension_semantics = [#tpu.dimension_semantics<parallel>, #tpu.dimension_semantics<parallel>], iteration_bounds = array<i64: 1, 1>, scalar_prefetch = 0 : i64, scratch_operands = 0 : i64, tpu.core_type = #tpu.core_type<tc>, window_params = [{transform_indices = @transform_0, window_bounds = array<i64: 304, 16>}, {transform_indices = @transform_1, window_bounds = array<i64: 16, 128>}, {transform_indices = @transform_2, window_bounds = array<i64: 1, 128>}, {transform_indices = @transform_3, window_bounds = array<i64: 1, 128>}, {transform_indices = @transform_4, window_bounds = array<i64: 304, 128>}]} {
    %c0 = arith.constant 0 : index
    %c0_0 = arith.constant 0 : index
    %0 = vector.load %arg2[%c0, %c0_0] : memref<304x16xf32, #tpu.memory_space<vmem>>, vector<304x16xf32>
    %c0_1 = arith.constant 0 : index
    %c0_2 = arith.constant 0 : index
    %1 = vector.load %arg3[%c0_1, %c0_2] : memref<16x128xf32, #tpu.memory_space<vmem>>, vector<16x128xf32>
    %cst = arith.constant dense<0.000000e+00> : vector<304x128xf32>
    %2 = tpu.matmul %0, %1, %cst {dimension_numbers = #tpu.dot_dimension_numbers<[1], [0], [0], [1], [0, 0, 1, 1], [], []>} : vector<304x16xf32>, vector<16x128xf32>, vector<304x128xf32> -> vector<304x128xf32>
    %c0_3 = arith.constant 0 : index
    %c0_4 = arith.constant 0 : index
    %3 = vector.load %arg4[%c0_3, %c0_4] : memref<1x128xf32, #tpu.memory_space<vmem>>, vector<1x128xf32>
    %4 = vector.broadcast %3 : vector<1x128xf32> to vector<304x128xf32>
    %5 = arith.mulf %2, %4 : vector<304x128xf32>
    %c0_5 = arith.constant 0 : index
    %c0_6 = arith.constant 0 : index
    %6 = vector.load %arg5[%c0_5, %c0_6] : memref<1x128xf32, #tpu.memory_space<vmem>>, vector<1x128xf32>
    %7 = vector.broadcast %6 : vector<1x128xf32> to vector<304x128xf32>
    %8 = arith.addf %5, %7 : vector<304x128xf32>
    %c0_7 = arith.constant 0 : index
    %c0_8 = arith.constant 0 : index
    %9 = vector.load %arg6[%c0_7, %c0_8] : memref<304x128xf32, #tpu.memory_space<vmem>>, vector<304x128xf32>
    tpu.vector_store %arg6[%c0_7, %c0_8], %8 {strides = array<i32>} : memref<304x128xf32, #tpu.memory_space<vmem>>, vector<304x128xf32>,
    return
  }
  func.func @transform_0(%arg0: i32, %arg1: i32) -> (i32, i32) {
    %c0_i32 = arith.constant 0 : i32
    %c0_i32_0 = arith.constant 0 : i32
    return %arg0, %c0_i32 : i32, i32
  }
  func.func @transform_1(%arg0: i32, %arg1: i32) -> (i32, i32) {
    %c0_i32 = arith.constant 0 : i32
    %c0_i32_0 = arith.constant 0 : i32
    return %c0_i32, %arg1 : i32, i32
  }
  func.func @transform_2(%arg0: i32, %arg1: i32) -> (i32, i32) {
    %c0_i32 = arith.constant 0 : i32
    %c0_i32_0 = arith.constant 0 : i32
    return %c0_i32, %arg1 : i32, i32
  }
  func.func @transform_3(%arg0: i32, %arg1: i32) -> (i32, i32) {
    %c0_i32 = arith.constant 0 : i32
    %c0_i32_0 = arith.constant 0 : i32
    return %c0_i32, %arg1 : i32, i32
  }
  func.func @transform_4(%arg0: i32, %arg1: i32) -> (i32, i32) {
    %c0_i32 = arith.constant 0 : i32
    return %arg0, %arg1 : i32, i32
  }
}

</mosaic_0001>

<llo_original>
// kernel: _matmul_padded.1
$region0: #{_matmul_padded.1}
  #allocation0 [shape = 'u32[]', space=smem, size = 0x4, offset = 0x4, fixed_abs, tag = 'smem constant byte address 0x4 - core index']
  #allocation1 [shape = 'u32[144,128]{1,0:T(1,128)}', space=vmem, size = 0x12000, scoped, tag = 'internal scratch']
  %s0 = inlined_call_operand.vmem [shape: f32[304,16], index: 0, kind: input, shape index: {}]
  %s1 = inlined_call_operand.vmem [shape: f32[16,128], index: 1, kind: input, shape index: {}]
  %s2 = inlined_call_operand.vmem [shape: f32[1,128], index: 2, kind: input, shape index: {}]
  %s3 = inlined_call_operand.vmem [shape: f32[1,128], index: 3, kind: input, shape index: {}]
  %s4 = inlined_call_operand.hbm [shape: f32[304,128], index: 4, kind: output, shape index: {}]
  %s5 = sld [smem:[#allocation0]]
  $region26: #{_matmul_padded.1} parent=0
    _
  %s7 = ssub.s32 1, %s5
  %s8 = scalar_select 0, %s7, %s5
  $region1: #{_matmul_padded.1} parent=0
    #allocation2 [shape = 'u8[155648]{0}', space=vmem, size = 0x26000, scoped, tag = 'output window, operand 0, single buffered']
    #allocation3 [shape = 's32[1]{0}', space=sflag, size = 0x4, scoped, tag = 'scoped memory for _matmul_padded.1']
    %9 = vsyncpa [#allocation3], 0
    // Predicated region
    $region2: #{_matmul_padded.1} parent=1 // pred_check
      _
    $region3: #{_matmul_padded.1} parent=1 // pred_check_branch
      %11 = sbr.rel (0) target = $region5
    $region4: #{_matmul_padded.1} parent=1 // pred_region
      _
    $region5: #{_matmul_padded.1} parent=1 // pred_fallthru
      _
    // Predicated region
    $region6: #{_matmul_padded.1} parent=1 // pred_check
      _
    $region7: #{_matmul_padded.1} parent=1 // pred_check_branch
      %13 = sbr.rel (0) target = $region9
    $region8: #{_matmul_padded.1} parent=1 // pred_region
      _
    $region9: #{_matmul_padded.1} parent=1 // pred_fallthru
      _
    // Predicated region
    $region10: #{_matmul_padded.1} parent=1 // pred_check
      _
    $region11: #{_matmul_padded.1} parent=1 // pred_check_branch
      %15 = sbr.rel (0) target = $region13
    $region12: #{_matmul_padded.1} parent=1 // pred_region
      _
    $region13: #{_matmul_padded.1} parent=1 // pred_fallthru
      _
    // Predicated region
    $region14: #{_matmul_padded.1} parent=1 // pred_check
      _
    $region15: #{_matmul_padded.1} parent=1 // pred_check_branch
      %17 = sbr.rel (0) target = $region17
    $region16: #{_matmul_padded.1} parent=1 // pred_region
      _
    $region17: #{_matmul_padded.1} parent=1 // pred_fallthru
      _
    %v18 = vld [vmem:[%s0] sm:$0xff]
    %v19 = vld [vmem:[%s0 + $0x8] sm:$0xff]
    %v20 = vld [vmem:[%s0 + $0x10] sm:$0xff]
    %v21 = vld [vmem:[%s0 + $0x18] sm:$0xff]
    %v22 = vld [vmem:[%s0 + $0x20] sm:$0xff]
    %v23 = vld [vmem:[%s0 + $0x28] sm:$0xff]
    %v24 = vld [vmem:[%s0 + $0x30] sm:$0xff]
    %v25 = vld [vmem:[%s0 + $0x38] sm:$0xff]
    %v26 = vld [vmem:[%s0 + $0x40] sm:$0xff]
    %v27 = vld [vmem:[%s0 + $0x48] sm:$0xff]
    %v28 = vld [vmem:[%s0 + $0x50] sm:$0xff]
    %v29 = vld [vmem:[%s0 + $0x58] sm:$0xff]
    %v30 = vld [vmem:[%s0 + $0x60] sm:$0xff]
    %v31 = vld [vmem:[%s0 + $0x68] sm:$0xff]
    %v32 = vld [vmem:[%s0 + $0x70] sm:$0xff]
    %v33 = vld [vmem:[%s0 + $0x78] sm:$0xff]
    %v34 = vld [vmem:[%s0 + $0x80] sm:$0xff]
    %v35 = vld [vmem:[%s0 + $0x88] sm:$0xff]
    %v36 = vld [vmem:[%s0 + $0x90] sm:$0xff]
    %v37 = vld [vmem:[%s0 + $0x98] sm:$0xff]
    %v38 = vld [vmem:[%s0 + $0xa0] sm:$0xff]
    %v39 = vld [vmem:[%s0 + $0xa8] sm:$0xff]
    %v40 = vld [vmem:[%s0 + $0xb0] sm:$0xff]
    %v41 = vld [vmem:[%s0 + $0xb8] sm:$0xff]
    %v42 = vld [vmem:[%s0 + $0xc0] sm:$0xff]
    %v43 = vld [vmem:[%s0 + $0xc8] sm:$0xff]
    %v44 = vld [vmem:[%s0 + $0xd0] sm:$0xff]
    %v45 = vld [vmem:[%s0 + $0xd8] sm:$0xff]
    %v46 = vld [vmem:[%s0 + $0xe0] sm:$0xff]
    %v47 = vld [vmem:[%s0 + $0xe8] sm:$0xff]
    %v48 = vld [vmem:[%s0 + $0xf0] sm:$0xff]
    %v49 = vld [vmem:[%s0 + $0xf8] sm:$0xff]
    %v50 = vld [vmem:[%s0 + $0x100] sm:$0xff]
    %v51 = vld [vmem:[%s0 + $0x108] sm:$0xff]
    %v52 = vld [vmem:[%s0 + $0x110] sm:$0xff]
    %v53 = vld [vmem:[%s0 + $0x118] sm:$0xff]
    %v54 = vld [vmem:[%s0 + $0x120] sm:$0xff]
    %v55 = vld [vmem:[%s0 + $0x128] sm:$0xff]
    %v56 = vld [vmem:[%s1] sm:$0xff]
    %v57 = vld [vmem:[%s1 + $0x8] sm:$0xff]
    %vm58 = vcmask 130048
    %v60 = vsel %vm58, %v18, 0
    %v63 = vsel %vm58, %v19, 0
    %v66 = vsel %vm58, %v20, 0
    %v69 = vsel %vm58, %v21, 0
    %v72 = vsel %vm58, %v22, 0
    %v75 = vsel %vm58, %v23, 0
    %v78 = vsel %vm58, %v24, 0
    %v81 = vsel %vm58, %v25, 0
    %v84 = vsel %vm58, %v26, 0
    %v87 = vsel %vm58, %v27, 0
    %v90 = vsel %vm58, %v28, 0
    %v93 = vsel %vm58, %v29, 0
    %v96 = vsel %vm58, %v30, 0
    %v99 = vsel %vm58, %v31, 0
    %v102 = vsel %vm58, %v32, 0
    %v105 = vsel %vm58, %v33, 0
    %v108 = vsel %vm58, %v34, 0
    %v111 = vsel %vm58, %v35, 0
    %v114 = vsel %vm58, %v36, 0
    %v117 = vsel %vm58, %v37, 0
    %v120 = vsel %vm58, %v38, 0
    %v123 = vsel %vm58, %v39, 0
    %v126 = vsel %vm58, %v40, 0
    %v129 = vsel %vm58, %v41, 0
    %v132 = vsel %vm58, %v42, 0
    %v135 = vsel %vm58, %v43, 0
    %v138 = vsel %vm58, %v44, 0
    %v141 = vsel %vm58, %v45, 0
    %v144 = vsel %vm58, %v46, 0
    %v147 = vsel %vm58, %v47, 0
    %v150 = vsel %vm58, %v48, 0
    %v153 = vsel %vm58, %v49, 0
    %v156 = vsel %vm58, %v50, 0
    %v159 = vsel %vm58, %v51, 0
    %v162 = vsel %vm58, %v52, 0
    %v165 = vsel %vm58, %v53, 0
    %v168 = vsel %vm58, %v54, 0
    %v171 = vsel %vm58, %v55, 0
    %173 = vmatprep.subr.mxu0 0.0
    %174 = vmatpush1.msra.mxu0 %v56
    %175 = vmatprep.subr.mxu0 0.0
    %176 = vmatpush1.msra.mxu0 %v57
    %177 = vmatprep.subr.mxu0 0.0
    %178 = vmatpush1.msra.mxu0 0.0
    %179 = vmatprep.subr.mxu0 0.0
    %180 = vmatpush1.msra.mxu0 0.0
    %181 = vmatprep.subr.mxu0 0.0
    %182 = vmatpush1.msra.mxu0 0.0
    %183 = vmatprep.subr.mxu0 0.0
    %184 = vmatpush1.msra.mxu0 0.0
    %185 = vmatprep.subr.mxu0 0.0
    %186 = vmatpush1.msra.mxu0 0.0
    %187 = vmatprep.subr.mxu0 0.0
    %188 = vmatpush1.msra.mxu0 0.0
    %189 = vmatprep.subr.mxu0 0.0
    %190 = vmatpush1.msra.mxu0 0.0
    %191 = vmatprep.subr.mxu0 0.0
    %192 = vmatpush1.msra.mxu0 0.0
    %193 = vmatprep.subr.mxu0 0.0
    %194 = vmatpush1.msra.mxu0 0.0
    %195 = vmatprep.subr.mxu0 0.0
    %196 = vmatpush1.msra.mxu0 0.0
    %197 = vmatprep.subr.mxu0 0.0
    %198 = vmatpush1.msra.mxu0 0.0
    %199 = vmatprep.subr.mxu0 0.0
    %200 = vmatpush1.msra.mxu0 0.0
    %201 = vmatprep.subr.mxu0 0.0
    %202 = vmatpush1.msra.mxu0 0.0
    %203 = vmatprep.subr.mxu0 0.0
    %204 = vmatpush1.msra.mxu0 0.0
    %205 = vmatprep.subr.mxu0 0.0
    %206 = vmatpush1.msra.mxu0 0.0
    %207 = vmatprep.subr.mxu0 0.0
    %208 = vmatpush1.msra.mxu0 0.0
    %209 = vmatprep.subr.mxu0 0.0
    %210 = vmatpush1.msra.mxu0 0.0
    %211 = vmatprep.subr.mxu0 0.0
    %212 = vmatpush1.msra.mxu0 0.0
    %213 = vmatprep.subr.mxu0 0.0
    %214 = vmatpush1.msra.mxu0 0.0
    %215 = vmatprep.subr.mxu0 0.0
    %216 = vmatpush1.msra.mxu0 0.0
    %217 = vmatprep.subr.mxu0 0.0
    %218 = vmatpush1.msra.mxu0 0.0
    %219 = vmatprep.subr.mxu0 0.0
    %220 = vmatpush1.msra.mxu0 0.0
    %221 = vmatprep.subr.mxu0 0.0
    %222 = vmatpush1.msra.mxu0 0.0
    %223 = vmatprep.subr.mxu0 0.0
    %224 = vmatpush1.msra.mxu0 0.0
    %225 = vmatprep.subr.mxu0 0.0
    %226 = vmatpush1.msra.mxu0 0.0
    %227 = vmatprep.subr.mxu0 0.0
    %228 = vmatpush1.msra.mxu0 0.0
    %229 = vmatprep.subr.mxu0 0.0
    %230 = vmatpush1.msra.mxu0 0.0
    %231 = vmatprep.subr.mxu0 0.0
    %232 = vmatpush1.msra.mxu0 0.0
    %233 = vmatprep.subr.mxu0 0.0
    %234 = vmatpush1.msra.mxu0 0.0
    %235 = vmatprep.subr.mxu0 0.0
    %236 = vmatpush1.msra.mxu0 0.0
    %237 = vmatprep.mubr.f32.mxu0 0.0
    %238 = vmatmul.mubr.f32.gmra.mrb[0].mxu0 %v60
    %v239 = vpop.f32.mrb[0].mxu0
    %v240 = vadd.f32 0.0, %v239
    %v241 = vpop.f32.mrb[0].mxu0
    %242 = vmatprep.mubr.f32.mxu0 0.0
    %243 = vmatmul.mubr.f32.gmra.mrb[0].mxu0 %v63
    %v244 = vpop.f32.mrb[0].mxu0
    %v245 = vadd.f32 0.0, %v244
    %v246 = vpop.f32.mrb[0].mxu0
    %247 = vmatprep.mubr.f32.mxu0 0.0
    %248 = vmatmul.mubr.f32.gmra.mrb[0].mxu0 %v66
    %v249 = vpop.f32.mrb[0].mxu0
    %v250 = vadd.f32 0.0, %v249
    %v251 = vpop.f32.mrb[0].mxu0
    %252 = vmatprep.mubr.f32.mxu0 0.0
    %253 = vmatmul.mubr.f32.gmra.mrb[0].mxu0 %v69
    %v254 = vpop.f32.mrb[0].mxu0
    %v255 = vadd.f32 0.0, %v254
    %v256 = vpop.f32.mrb[0].mxu0
    %257 = vmatprep.mubr.f32.mxu0 0.0
    %258 = vmatmul.mubr.f32.gmra.mrb[0].mxu0 %v72
    %v259 = vpop.f32.mrb[0].mxu0
    %v260 = vadd.f32 0.0, %v259
    %v261 = vpop.f32.mrb[0].mxu0
    %262 = vmatprep.mubr.f32.mxu0 0.0
    %263 = vmatmul.mubr.f32.gmra.mrb[0].mxu0 %v75
    %v264 = vpop.f32.mrb[0].mxu0
    %v265 = vadd.f32 0.0, %v264
    %v266 = vpop.f32.mrb[0].mxu0
    %267 = vmatprep.mubr.f32.mxu0 0.0
    %268 = vmatmul.mubr.f32.gmra.mrb[0].mxu0 %v78
    %v269 = vpop.f32.mrb[0].mxu0
    %v270 = vadd.f32 0.0, %v269
    %v271 = vpop.f32.mrb[0].mxu0
    %272 = vmatprep.mubr.f32.mxu0 0.0
    %273 = vmatmul.mubr.f32.gmra.mrb[0].mxu0 %v81
    %v274 = vpop.f32.mrb[0].mxu0
    %v275 = vadd.f32 0.0, %v274
    %v276 = vpop.f32.mrb[0].mxu0
    %277 = vmatprep.mubr.f32.mxu0 0.0
    %278 = vmatmul.mubr.f32.gmra.mrb[0].mxu0 %v84
    %v279 = vpop.f32.mrb[0].mxu0
    %v280 = vadd.f32 0.0, %v279
    %v281 = vpop.f32.mrb[0].mxu0
    %282 = vmatprep.mubr.f32.mxu0 0.0
    %283 = vmatmul.mubr.f32.gmra.mrb[0].mxu0 %v87
    %v284 = vpop.f32.mrb[0].mxu0
    %v285 = vadd.f32 0.0, %v284
    %v286 = vpop.f32.mrb[0].mxu0
    %287 = vmatprep.mubr.f32.mxu0 0.0
    %288 = vmatmul.mubr.f32.gmra.mrb[0].mxu0 %v90
    %v289 = vpop.f32.mrb[0].mxu0
    %v290 = vadd.f32 0.0, %v289
    %v291 = vpop.f32.mrb[0].mxu0
    %292 = vmatprep.mubr.f32.mxu0 0.0
    %293 = vmatmul.mubr.f32.gmra.mrb[0].mxu0 %v93
    %v294 = vpop.f32.mrb[0].mxu0
    %v295 = vadd.f32 0.0, %v294
    %v296 = vpop.f32.mrb[0].mxu0
    %297 = vmatprep.mubr.f32.mxu0 0.0
    %298 = vmatmul.mubr.f32.gmra.mrb[0].mxu0 %v96
    %v299 = vpop.f32.mrb[0].mxu0
    %v300 = vadd.f32 0.0, %v299
    %v301 = vpop.f32.mrb[0].mxu0
    %302 = vmatprep.mubr.f32.mxu0 0.0
    %303 = vmatmul.mubr.f32.gmra.mrb[0].mxu0 %v99
    %v304 = vpop.f32.mrb[0].mxu0
    %v305 = vadd.f32 0.0, %v304
    %v306 = vpop.f32.mrb[0].mxu0
    %307 = vmatprep.mubr.f32.mxu0 0.0
    %308 = vmatmul.mubr.f32.gmra.mrb[0].mxu0 %v102
    %v309 = vpop.f32.mrb[0].mxu0
    %v310 = vadd.f32 0.0, %v309
    %v311 = vpop.f32.mrb[0].mxu0
    %312 = vmatprep.mubr.f32.mxu0 0.0
    %313 = vmatmul.mubr.f32.gmra.mrb[0].mxu0 %v105
    %v314 = vpop.f32.mrb[0].mxu0
    %v315 = vadd.f32 0.0, %v314
    %v316 = vpop.f32.mrb[0].mxu0
    %317 = vmatprep.mubr.f32.mxu0 0.0
    %318 = vmatmul.mubr.f32.gmra.mrb[0].mxu0 %v108
    %v319 = vpop.f32.mrb[0].mxu0
    %v320 = vadd.f32 0.0, %v319
    %v321 = vpop.f32.mrb[0].mxu0
    %322 = vmatprep.mubr.f32.mxu0 0.0
    %323 = vmatmul.mubr.f32.gmra.mrb[0].mxu0 %v111
    %v324 = vpop.f32.mrb[0].mxu0
    %v325 = vadd.f32 0.0, %v324
    %v326 = vpop.f32.mrb[0].mxu0
    %327 = vmatprep.mubr.f32.mxu0 0.0
    %328 = vmatmul.mubr.f32.gmra.mrb[0].mxu0 %v114
    %v329 = vpop.f32.mrb[0].mxu0
    %v330 = vadd.f32 0.0, %v329
    %v331 = vpop.f32.mrb[0].mxu0
    %332 = vmatprep.mubr.f32.mxu0 0.0
    %333 = vmatmul.mubr.f32.gmra.mrb[0].mxu0 %v117
    %v334 = vpop.f32.mrb[0].mxu0
    %v335 = vadd.f32 0.0, %v334
    %v336 = vpop.f32.mrb[0].mxu0
    %337 = vmatprep.mubr.f32.mxu0 0.0
    %338 = vmatmul.mubr.f32.gmra.mrb[0].mxu0 %v120
    %v339 = vpop.f32.mrb[0].mxu0
    %v340 = vadd.f32 0.0, %v339
    %v341 = vpop.f32.mrb[0].mxu0
    %342 = vmatprep.mubr.f32.mxu0 0.0
    %343 = vmatmul.mubr.f32.gmra.mrb[0].mxu0 %v123
    %v344 = vpop.f32.mrb[0].mxu0
    %v345 = vadd.f32 0.0, %v344
    %v346 = vpop.f32.mrb[0].mxu0
    %347 = vmatprep.mubr.f32.mxu0 0.0
    %348 = vmatmul.mubr.f32.gmra.mrb[0].mxu0 %v126
    %v349 = vpop.f32.mrb[0].mxu0
    %v350 = vadd.f32 0.0, %v349
    %v351 = vpop.f32.mrb[0].mxu0
    %352 = vmatprep.mubr.f32.mxu0 0.0
    %353 = vmatmul.mubr.f32.gmra.mrb[0].mxu0 %v129
    %v354 = vpop.f32.mrb[0].mxu0
    %v355 = vadd.f32 0.0, %v354
    %v356 = vpop.f32.mrb[0].mxu0
    %357 = vmatprep.mubr.f32.mxu0 0.0
    %358 = vmatmul.mubr.f32.gmra.mrb[0].mxu0 %v132
    %v359 = vpop.f32.mrb[0].mxu0
    %v360 = vadd.f32 0.0, %v359
    %v361 = vpop.f32.mrb[0].mxu0
    %362 = vmatprep.mubr.f32.mxu0 0.0
    %363 = vmatmul.mubr.f32.gmra.mrb[0].mxu0 %v135
    %v364 = vpop.f32.mrb[0].mxu0
    %v365 = vadd.f32 0.0, %v364
    %v366 = vpop.f32.mrb[0].mxu0
    %367 = vmatprep.mubr.f32.mxu0 0.0
    %368 = vmatmul.mubr.f32.gmra.mrb[0].mxu0 %v138
    %v369 = vpop.f32.mrb[0].mxu0
    %v370 = vadd.f32 0.0, %v369
    %v371 = vpop.f32.mrb[0].mxu0
    %372 = vmatprep.mubr.f32.mxu0 0.0
    %373 = vmatmul.mubr.f32.gmra.mrb[0].mxu0 %v141
    %v374 = vpop.f32.mrb[0].mxu0
    %v375 = vadd.f32 0.0, %v374
    %v376 = vpop.f32.mrb[0].mxu0
    %377 = vmatprep.mubr.f32.mxu0 0.0
    %378 = vmatmul.mubr.f32.gmra.mrb[0].mxu0 %v144
    %v379 = vpop.f32.mrb[0].mxu0
    %v380 = vadd.f32 0.0, %v379
    %v381 = vpop.f32.mrb[0].mxu0
    %382 = vmatprep.mubr.f32.mxu0 0.0
    %383 = vmatmul.mubr.f32.gmra.mrb[0].mxu0 %v147
    %v384 = vpop.f32.mrb[0].mxu0
    %v385 = vadd.f32 0.0, %v384
    %v386 = vpop.f32.mrb[0].mxu0
    %387 = vmatprep.mubr.f32.mxu0 0.0
    %388 = vmatmul.mubr.f32.gmra.mrb[0].mxu0 %v150
    %v389 = vpop.f32.mrb[0].mxu0
    %v390 = vadd.f32 0.0, %v389
    %v391 = vpop.f32.mrb[0].mxu0
    %392 = vmatprep.mubr.f32.mxu0 0.0
    %393 = vmatmul.mubr.f32.gmra.mrb[0].mxu0 %v153
    %v394 = vpop.f32.mrb[0].mxu0
    %v395 = vadd.f32 0.0, %v394
    %v396 = vpop.f32.mrb[0].mxu0
    %397 = vmatprep.mubr.f32.mxu0 0.0
    %398 = vmatmul.mubr.f32.gmra.mrb[0].mxu0 %v156
    %v399 = vpop.f32.mrb[0].mxu0
    %v400 = vadd.f32 0.0, %v399
    %v401 = vpop.f32.mrb[0].mxu0
    %402 = vmatprep.mubr.f32.mxu0 0.0
    %403 = vmatmul.mubr.f32.gmra.mrb[0].mxu0 %v159
    %v404 = vpop.f32.mrb[0].mxu0
    %v405 = vadd.f32 0.0, %v404
    %v406 = vpop.f32.mrb[0].mxu0
    %407 = vmatprep.mubr.f32.mxu0 0.0
    %408 = vmatmul.mubr.f32.gmra.mrb[0].mxu0 %v162
    %v409 = vpop.f32.mrb[0].mxu0
    %v410 = vadd.f32 0.0, %v409
    %v411 = vpop.f32.mrb[0].mxu0
    %412 = vmatprep.mubr.f32.mxu0 0.0
    %413 = vmatmul.mubr.f32.gmra.mrb[0].mxu0 %v165
    %v414 = vpop.f32.mrb[0].mxu0
    %v415 = vadd.f32 0.0, %v414
    %v416 = vpop.f32.mrb[0].mxu0
    %417 = vmatprep.mubr.f32.mxu0 0.0
    %418 = vmatmul.mubr.f32.gmra.mrb[0].mxu0 %v168
    %v419 = vpop.f32.mrb[0].mxu0
    %v420 = vadd.f32 0.0, %v419
    %v421 = vpop.f32.mrb[0].mxu0
    %422 = vmatprep.mubr.f32.mxu0 0.0
    %423 = vmatmul.mubr.f32.gmra.mrb[0].mxu0 %v171
    %v424 = vpop.f32.mrb[0].mxu0
    %v425 = vadd.f32 0.0, %v424
    %v426 = vpop.f32.mrb[0].mxu0
    %427 = vdwg.mxu0
    %v428 = vld [vmem:[%s2] sm:$0x1]
    %v430 = vlaneseq
    %v431 = vshrl.u32 %v430, 7
    %v432 = vsub.s32 0, %v431
    %v433 = vrot.slane %v428, %v432
    %v435 = vmul.f32 %v240, %v433
    %v436 = vmul.f32 %v245, %v433
    %v437 = vmul.f32 %v250, %v433
    %v438 = vmul.f32 %v255, %v433
    %v439 = vmul.f32 %v260, %v433
    %v440 = vmul.f32 %v265, %v433
    %v441 = vmul.f32 %v270, %v433
    %v442 = vmul.f32 %v275, %v433
    %v443 = vmul.f32 %v280, %v433
    %v444 = vmul.f32 %v285, %v433
    %v445 = vmul.f32 %v290, %v433
    %v446 = vmul.f32 %v295, %v433
    %v447 = vmul.f32 %v300, %v433
    %v448 = vmul.f32 %v305, %v433
    %v449 = vmul.f32 %v310, %v433
    %v450 = vmul.f32 %v315, %v433
    %v451 = vmul.f32 %v320, %v433
    %v452 = vmul.f32 %v325, %v433
    %v453 = vmul.f32 %v330, %v433
    %v454 = vmul.f32 %v335, %v433
    %v455 = vmul.f32 %v340, %v433
    %v456 = vmul.f32 %v345, %v433
    %v457 = vmul.f32 %v350, %v433
    %v458 = vmul.f32 %v355, %v433
    %v459 = vmul.f32 %v360, %v433
    %v460 = vmul.f32 %v365, %v433
    %v461 = vmul.f32 %v370, %v433
    %v462 = vmul.f32 %v375, %v433
    %v463 = vmul.f32 %v380, %v433
    %v464 = vmul.f32 %v385, %v433
    %v465 = vmul.f32 %v390, %v433
    %v466 = vmul.f32 %v395, %v433
    %v467 = vmul.f32 %v400, %v433
    %v468 = vmul.f32 %v405, %v433
    %v469 = vmul.f32 %v410, %v433
    %v470 = vmul.f32 %v415, %v433
    %v471 = vmul.f32 %v420, %v433
    %v472 = vmul.f32 %v425, %v433
    %v473 = vld [vmem:[%s3] sm:$0x1]
    %v475 = vlaneseq
    %v476 = vshrl.u32 %v475, 7
    %v477 = vsub.s32 0, %v476
    %v478 = vrot.slane %v473, %v477
    %v480 = vadd.f32 %v435, %v478
    %v481 = vadd.f32 %v436, %v478
    %v482 = vadd.f32 %v437, %v478
    %v483 = vadd.f32 %v438, %v478
    %v484 = vadd.f32 %v439, %v478
    %v485 = vadd.f32 %v440, %v478
    %v486 = vadd.f32 %v441, %v478
    %v487 = vadd.f32 %v442, %v478
    %v488 = vadd.f32 %v443, %v478
    %v489 = vadd.f32 %v444, %v478
    %v490 = vadd.f32 %v445, %v478
    %v491 = vadd.f32 %v446, %v478
    %v492 = vadd.f32 %v447, %v478
    %v493 = vadd.f32 %v448, %v478
    %v494 = vadd.f32 %v449, %v478
    %v495 = vadd.f32 %v450, %v478
    %v496 = vadd.f32 %v451, %v478
    %v497 = vadd.f32 %v452, %v478
    %v498 = vadd.f32 %v453, %v478
    %v499 = vadd.f32 %v454, %v478
    %v500 = vadd.f32 %v455, %v478
    %v501 = vadd.f32 %v456, %v478
    %v502 = vadd.f32 %v457, %v478
    %v503 = vadd.f32 %v458, %v478
    %v504 = vadd.f32 %v459, %v478
    %v505 = vadd.f32 %v460, %v478
    %v506 = vadd.f32 %v461, %v478
    %v507 = vadd.f32 %v462, %v478
    %v508 = vadd.f32 %v463, %v478
    %v509 = vadd.f32 %v464, %v478
    %v510 = vadd.f32 %v465, %v478
    %v511 = vadd.f32 %v466, %v478
    %v512 = vadd.f32 %v467, %v478
    %v513 = vadd.f32 %v468, %v478
    %v514 = vadd.f32 %v469, %v478
    %v515 = vadd.f32 %v470, %v478
    %v516 = vadd.f32 %v471, %v478
    %v517 = vadd.f32 %v472, %v478
    %518 = vst [vmem:[#allocation2] sm:$0xff] %v480
    %519 = vst [vmem:[#allocation2 + $0x8] sm:$0xff] %v481
    %520 = vst [vmem:[#allocation2 + $0x10] sm:$0xff] %v482
    %521 = vst [vmem:[#allocation2 + $0x18] sm:$0xff] %v483
    %522 = vst [vmem:[#allocation2 + $0x20] sm:$0xff] %v484
    %523 = vst [vmem:[#allocation2 + $0x28] sm:$0xff] %v485
    %524 = vst [vmem:[#allocation2 + $0x30] sm:$0xff] %v486
    %525 = vst [vmem:[#allocation2 + $0x38] sm:$0xff] %v487
    %526 = vst [vmem:[#allocation2 + $0x40] sm:$0xff] %v488
    %527 = vst [vmem:[#allocation2 + $0x48] sm:$0xff] %v489
    %528 = vst [vmem:[#allocation2 + $0x50] sm:$0xff] %v490
    %529 = vst [vmem:[#allocation2 + $0x58] sm:$0xff] %v491
    %530 = vst [vmem:[#allocation2 + $0x60] sm:$0xff] %v492
    %531 = vst [vmem:[#allocation2 + $0x68] sm:$0xff] %v493
    %532 = vst [vmem:[#allocation2 + $0x70] sm:$0xff] %v494
    %533 = vst [vmem:[#allocation2 + $0x78] sm:$0xff] %v495
    %534 = vst [vmem:[#allocation2 + $0x80] sm:$0xff] %v496
    %535 = vst [vmem:[#allocation2 + $0x88] sm:$0xff] %v497
    %536 = vst [vmem:[#allocation2 + $0x90] sm:$0xff] %v498
    %537 = vst [vmem:[#allocation2 + $0x98] sm:$0xff] %v499
    %538 = vst [vmem:[#allocation2 + $0xa0] sm:$0xff] %v500
    %539 = vst [vmem:[#allocation2 + $0xa8] sm:$0xff] %v501
    %540 = vst [vmem:[#allocation2 + $0xb0] sm:$0xff] %v502
    %541 = vst [vmem:[#allocation2 + $0xb8] sm:$0xff] %v503
    %542 = vst [vmem:[#allocation2 + $0xc0] sm:$0xff] %v504
    %543 = vst [vmem:[#allocation2 + $0xc8] sm:$0xff] %v505
    %544 = vst [vmem:[#allocation2 + $0xd0] sm:$0xff] %v506
    %545 = vst [vmem:[#allocation2 + $0xd8] sm:$0xff] %v507
    %546 = vst [vmem:[#allocation2 + $0xe0] sm:$0xff] %v508
    %547 = vst [vmem:[#allocation2 + $0xe8] sm:$0xff] %v509
    %548 = vst [vmem:[#allocation2 + $0xf0] sm:$0xff] %v510
    %549 = vst [vmem:[#allocation2 + $0xf8] sm:$0xff] %v511
    %550 = vst [vmem:[#allocation2 + $0x100] sm:$0xff] %v512
    %551 = vst [vmem:[#allocation2 + $0x108] sm:$0xff] %v513
    %552 = vst [vmem:[#allocation2 + $0x110] sm:$0xff] %v514
    %553 = vst [vmem:[#allocation2 + $0x118] sm:$0xff] %v515
    %554 = vst [vmem:[#allocation2 + $0x120] sm:$0xff] %v516
    %555 = vst [vmem:[#allocation2 + $0x128] sm:$0xff] %v517
    // Predicated region
    $region18: #{_matmul_padded.1} parent=1 // pred_check
      _
    $region19: #{_matmul_padded.1} parent=1 // pred_check_branch
      %557 = sbr.rel (0) target = $region21
    $region20: #{_matmul_padded.1} parent=1 // pred_region
      %s559 = ssub.s32 4864, 4864
      %560 = vsyncadd [#allocation3], %s559
      %s561 = sshll.u32 [#allocation2], 4
      %s562 = int_to_ptr.vmem [resolvable:$true] %s561
      %567 = dma.vmem_to_hbm [thread:$0]  %s562, 4864, %s4, [#allocation3], 128, 128, 8
    $region21: #{_matmul_padded.1} parent=1 // pred_fallthru
      _
    // Predicated region
    $region22: #{_matmul_padded.1} parent=1 // pred_check
      _
    $region23: #{_matmul_padded.1} parent=1 // pred_check_branch
      %569 = sbr.rel (0) target = $region25
    $region24: #{_matmul_padded.1} parent=1 // pred_region
      %570 = dma.done [#allocation3], 4864
    $region25: #{_matmul_padded.1} parent=1 // pred_fallthru
      _
    %571 = vsyncpa [#allocation3], 1

</llo_original>
